<compile_context>
chip_gen: v6e
topology: v6e:2x2x1
jax: 0.10.0
libtpu: 0.0.40
codegen_flags: <defaults>
</compile_context>

<pallas_src>
import jax
import jax.numpy as jnp
from jax.experimental import pallas as pl
from jax.experimental.pallas import tpu as pltpu


def _patch_embed_kernel(x_ref, w_ref, pos_ref, o_ref):
    # x_ref:   (Rb, Cin)  flattened patch rows (compute dtype)
    # w_ref:   (Cin, Ep)  linear weight, transposed & E-padded (compute dtype)
    # pos_ref: (Rb, Ep)   positions + bias, pre-tiled per row block (f32)
    # o_ref:   (Rb, Ep)
    y = jnp.dot(x_ref[...], w_ref[...], preferred_element_type=jnp.float32)  # MXU, f32 acc
    o_ref[...] = (y + pos_ref[...]).astype(o_ref.dtype)                      # f32 VPU add


def _round_up(x, m):
    return ((x + m - 1) // m) * m


def _per_core_vmem_bytes():
    try:
        info = pltpu.get_tpu_info()
        for name in ("vmem_capacity_bytes", "vmem_size_bytes", "vmem_bytes"):
            v = getattr(info, name, None)
            if v:
                return int(v)
    except Exception:
        pass
    return 0


def _vmem_policy():
    """Returns (scoped vmem_limit_bytes or None, chooser budget) per generation."""
    cap = _per_core_vmem_bytes()
    mib = 1024 * 1024
    if cap >= 128 * mib:          # v5e / v6e: 128 MiB physical VMEM
        return 100 * mib, 64 * mib
    if cap >= 64 * mib:           # v7x: 64 MiB per TensorCore - do NOT copy the big budget
        return 40 * mib, 28 * mib
    return None, 8 * mib          # unknown / small chips: keep compiler defaults


def _choose_images_per_step(n_imgs, rows_per_img, cin, e_pad, in_item, out_item,
                            vmem_budget, min_grid_steps=2, target_rows=1024):
    """Largest images-per-step Nb whose per-step VMEM footprint fits the budget,
    capped so the grid keeps >= min_grid_steps steps (keeps both v7x TensorCores
    busy), stopping once a step carries >= target_rows MXU rows."""
    weight_bytes = cin * e_pad * in_item                    # single-buffered (invariant)

    def step_bytes(nb):
        rb = nb * rows_per_img
        return (2 * rb * cin * in_item                      # patches block, double-buffered
                + 2 * rb * e_pad * out_item                 # output block, double-buffered
                + rb * e_pad * 4                            # f32 matmul result before cast
                + rb * e_pad * 4                            # f32 positions(+bias) block
                + weight_bytes)

    max_nb = max(1, pl.cdiv(n_imgs, min_grid_steps))
    best = 1
    for nb in range(1, max_nb + 1):
        if nb > 1 and step_bytes(nb) > vmem_budget:
            break
        best = nb
        if nb * rows_per_img >= target_rows:
            break
    return best


def patch_embedding_forward(x, weight, bias, positions, patch_size,
                            compute_dtype=jnp.bfloat16, out_dtype=None,
                            single_buffer_invariants=True):
    """x: (N, C, H, W).  weight: (E, Cin) PyTorch nn.Linear layout.  bias: (E,).
    positions: (1, L, E).  Returns (N, L, E) in out_dtype (default: compute_dtype)."""
    if out_dtype is None:
        out_dtype = compute_dtype

    N, C, H, W = x.shape
    P = patch_size
    hp, wp = H // P, W // P
    L = hp * wp
    E, Cin = weight.shape
    assert Cin == C * P * P
    assert positions.shape == (1, L, E)

    in_item = jnp.dtype(compute_dtype).itemsize
    out_item = jnp.dtype(out_dtype).itemsize
    sub = max(32 // in_item, 32 // out_item, 8)   # sublane packing: 8 for f32, 16 for bf16
    L_pad = _round_up(L, sub)                     # keeps every row block sublane-aligned
    E_pad = _round_up(E, 128)                     # lane-dense stores / full MXU columns

    # Unfold(kernel=stride=P) + permute(0,2,1): (N,C,H,W) -> (N, L, C*P*P) with the
    # (c, i, j) feature order of nn.Unfold.  Host-side layout glue; the compute-dtype
    # cast is co-located with the transpose so the materialized HBM copy is half-size.
    patches = x.astype(compute_dtype)
    patches = patches.reshape(N, C, hp, P, wp, P).transpose(0, 2, 4, 1, 3, 5)
    patches = patches.reshape(N, L, Cin)
    if L_pad != L:
        patches = jnp.pad(patches, ((0, 0), (0, L_pad - L), (0, 0)))
    patches = patches.reshape(N * L_pad, Cin)
    # TODO(synk): Cin is left un-padded; if it is far below 128 the input loads are
    # lane-masked, but zero-padding it would inflate the dominant HBM input stream.

    # Linear bias folded into the positional table (one f32 add in-kernel).
    pos_b = positions.reshape(L, E).astype(jnp.float32) + bias.astype(jnp.float32)
    if E_pad != E:
        pos_b = jnp.pad(pos_b, ((0, 0), (0, E_pad - E)))
    if L_pad != L:
        pos_b = jnp.pad(pos_b, ((0, L_pad - L), (0, 0)))

    w_t = weight.T.astype(compute_dtype)                    # (Cin, E)
    if E_pad != E:
        w_t = jnp.pad(w_t, ((0, 0), (0, E_pad - E)))        # (Cin, E_pad)

    vmem_limit, vmem_budget = _vmem_policy()
    Nb = _choose_images_per_step(N, L_pad, Cin, E_pad, in_item, out_item, vmem_budget)
    Rb = Nb * L_pad
    grid = (pl.cdiv(N, Nb),)                                # ragged last block OK

    pos_tiled = jnp.tile(pos_b, (Nb, 1))                    # (Rb, E_pad) f32, one row block

    flops = 2 * N * L_pad * Cin * E_pad
    bytes_accessed = (N * L_pad * Cin * in_item             # patches in
                      + Cin * E_pad * in_item               # weight
                      + Rb * E_pad * 4                      # positions + bias
                      + N * L_pad * E_pad * out_item)       # output

    def _invariant_spec(shape):
        # Grid-invariant operands: single-buffer to free VMEM for a bigger Rb.
        if single_buffer_invariants:
            return pl.BlockSpec(shape, lambda b: (0, 0), pipeline_mode=pl.Buffered(1))
        return pl.BlockSpec(shape, lambda b: (0, 0))

    out2d = pl.pallas_call(
        _patch_embed_kernel,
        out_shape=jax.ShapeDtypeStruct((N * L_pad, E_pad), out_dtype),
        grid=grid,
        in_specs=[
            pl.BlockSpec((Rb, Cin), lambda b: (b, 0)),
            _invariant_spec((Cin, E_pad)),
            _invariant_spec((Rb, E_pad)),
        ],
        out_specs=pl.BlockSpec((Rb, E_pad), lambda b: (b, 0)),
        compiler_params=pltpu.CompilerParams(
            dimension_semantics=("parallel",),
            vmem_limit_bytes=vmem_limit,
        ),
        cost_estimate=pl.CostEstimate(
            flops=flops, transcendentals=0, bytes_accessed=bytes_accessed),
    )(patches, w_t, pos_tiled)

    out = out2d.reshape(N, L_pad, E_pad)[:, :L, :E]
    # TODO(synk): nn.Dropout(0.1) is identity in eval mode; training-mode dropout
    # (in-kernel pltpu.prng_seed / prng_random_bits masking) is not implemented.
    return out


if __name__ == "__main__":
    # Small shapes consistent with the module.
    N, C, H, W = 2, 4, 16, 16
    patch_size = 4
    emb_size = 32

    c_in = C * patch_size * patch_size                    # 64
    num_patches = (H // patch_size) * (W // patch_size)   # 16

    key = jax.random.PRNGKey(0)
    kx, kw, kb, kp = jax.random.split(key, 4)

    x = jax.random.normal(kx, (N, C, H, W), dtype=jnp.float32)
    bound = 1.0 / (c_in ** 0.5)
    weight = jax.random.uniform(kw, (emb_size, c_in), minval=-bound, maxval=bound,
                                dtype=jnp.float32)
    bias = jax.random.uniform(kb, (emb_size,), minval=-bound, maxval=bound,
                              dtype=jnp.float32)
    positions = jax.random.normal(kp, (1, num_patches, emb_size), dtype=jnp.float32)

    # Pure-JAX f32 reference (same math).
    pr = x.reshape(N, C, H // patch_size, patch_size, W // patch_size, patch_size)
    pr = pr.transpose(0, 2, 4, 1, 3, 5).reshape(N, num_patches, c_in)
    ref = pr @ weight.T + bias + positions

    def run(compute_dtype, out_dtype, single_buffer):
        fwd = jax.jit(lambda a, w, b, p: patch_embedding_forward(
            a, w, b, p, patch_size,
            compute_dtype=compute_dtype, out_dtype=out_dtype,
            single_buffer_invariants=single_buffer))
        return jax.block_until_ready(fwd(x, weight, bias, positions))

    # Default fast path: bf16 in/out, f32 MXU accumulation.  Fall back to default
    # buffering of the invariant operands if Buffered(1) is unsupported.
    try:
        out_bf16 = run(jnp.bfloat16, None, True)
        single_buffer_ok = True
    except Exception:
        out_bf16 = run(jnp.bfloat16, None, False)
        single_buffer_ok = False

    assert out_bf16.shape == (N, num_patches, emb_size)
    assert out_bf16.dtype == jnp.bfloat16
    err = float(jnp.max(jnp.abs(out_bf16.astype(jnp.float32) - ref)))
    assert err < 8e-2, err

    # Strict f32 path (exact module semantics).
    out_f32 = run(jnp.float32, jnp.float32, single_buffer_ok)
    assert out_f32.shape == (N, num_patches, emb_size)
    assert jnp.allclose(out_f32, ref, atol=1e-5, rtol=1e-5), \
        float(jnp.max(jnp.abs(out_f32 - ref)))

    print("KERNEL_OK")
</pallas_src>

<mosaic_0001>
module attributes {stable_mosaic.version = 11 : i64} {
  func.func @_patch_embed_kernel(%arg0: i32, %arg1: memref<16x64xbf16, #tpu.memory_space<vmem>>, %arg2: memref<64x128xbf16, #tpu.memory_space<vmem>>, %arg3: memref<16x128xf32, #tpu.memory_space<vmem>>, %arg4: memref<16x128xbf16, #tpu.memory_space<vmem>>) attributes {dimension_semantics = [#tpu.dimension_semantics<parallel>], iteration_bounds = array<i64: 2>, scalar_prefetch = 0 : i64, scratch_operands = 0 : i64, tpu.core_type = #tpu.core_type<tc>, window_params = [{transform_indices = @transform_0, window_bounds = array<i64: 16, 64>}, {pipeline_mode = #tpu.pipeline_mode<synchronous>, transform_indices = @transform_1, window_bounds = array<i64: 64, 128>}, {pipeline_mode = #tpu.pipeline_mode<synchronous>, transform_indices = @transform_2, window_bounds = array<i64: 16, 128>}, {transform_indices = @transform_3, window_bounds = array<i64: 16, 128>}]} {
    %c0 = arith.constant 0 : index
    %c0_0 = arith.constant 0 : index
    %0 = vector.load %arg1[%c0, %c0_0] : memref<16x64xbf16, #tpu.memory_space<vmem>>, vector<16x64xbf16>
    %c0_1 = arith.constant 0 : index
    %c0_2 = arith.constant 0 : index
    %1 = vector.load %arg2[%c0_1, %c0_2] : memref<64x128xbf16, #tpu.memory_space<vmem>>, vector<64x128xbf16>
    %cst = arith.constant dense<0.000000e+00> : vector<16x128xf32>
    %2 = tpu.matmul %0, %1, %cst {dimension_numbers = #tpu.dot_dimension_numbers<[1], [0], [0], [1], [0, 0, 1, 1], [], []>} : vector<16x64xbf16>, vector<64x128xbf16>, vector<16x128xf32> -> vector<16x128xf32>
    %c0_3 = arith.constant 0 : index
    %c0_4 = arith.constant 0 : index
    %3 = vector.load %arg3[%c0_3, %c0_4] : memref<16x128xf32, #tpu.memory_space<vmem>>, vector<16x128xf32>
    %4 = arith.addf %2, %3 : vector<16x128xf32>
    %5 = arith.truncf %4 : vector<16x128xf32> to vector<16x128xbf16>
    %c0_5 = arith.constant 0 : index
    %c0_6 = arith.constant 0 : index
    %6 = vector.load %arg4[%c0_5, %c0_6] : memref<16x128xbf16, #tpu.memory_space<vmem>>, vector<16x128xbf16>
    tpu.vector_store %arg4[%c0_5, %c0_6], %5 {strides = array<i32>} : memref<16x128xbf16, #tpu.memory_space<vmem>>, vector<16x128xbf16>,
    return
  }
  func.func @transform_0(%arg0: i32) -> (i32, i32) {
    %c0_i32 = arith.constant 0 : i32
    %c0_i32_0 = arith.constant 0 : i32
    return %arg0, %c0_i32 : i32, i32
  }
  func.func @transform_1(%arg0: i32) -> (i32, i32) {
    %c0_i32 = arith.constant 0 : i32
    %c0_i32_0 = arith.constant 0 : i32
    %c0_i32_1 = arith.constant 0 : i32
    return %c0_i32, %c0_i32_0 : i32, i32
  }
  func.func @transform_2(%arg0: i32) -> (i32, i32) {
    %c0_i32 = arith.constant 0 : i32
    %c0_i32_0 = arith.constant 0 : i32
    %c0_i32_1 = arith.constant 0 : i32
    return %c0_i32, %c0_i32_0 : i32, i32
  }
  func.func @transform_3(%arg0: i32) -> (i32, i32) {
    %c0_i32 = arith.constant 0 : i32
    %c0_i32_0 = arith.constant 0 : i32
    return %arg0, %c0_i32 : i32, i32
  }
}

module attributes {stable_mosaic.version = 11 : i64} {
  func.func @_patch_embed_kernel(%arg0: i32, %arg1: memref<16x64xbf16, #tpu.memory_space<vmem>>, %arg2: memref<64x128xbf16, #tpu.memory_space<vmem>>, %arg3: memref<16x128xf32, #tpu.memory_space<vmem>>, %arg4: memref<16x128xbf16, #tpu.memory_space<vmem>>) attributes {dimension_semantics = [#tpu.dimension_semantics<parallel>], iteration_bounds = array<i64: 2>, scalar_prefetch = 0 : i64, scratch_operands = 0 : i64, tpu.core_type = #tpu.core_type<tc>, window_params = [{transform_indices = @transform_0, window_bounds = array<i64: 16, 64>}, {pipeline_mode = #tpu.pipeline_mode<synchronous>, transform_indices = @transform_1, window_bounds = array<i64: 64, 128>}, {pipeline_mode = #tpu.pipeline_mode<synchronous>, transform_indices = @transform_2, window_bounds = array<i64: 16, 128>}, {transform_indices = @transform_3, window_bounds = array<i64: 16, 128>}]} {
    %c0 = arith.constant 0 : index
    %c0_0 = arith.constant 0 : index
    %0 = vector.load %arg1[%c0, %c0_0] : memref<16x64xbf16, #tpu.memory_space<vmem>>, vector<16x64xbf16>
    %c0_1 = arith.constant 0 : index
    %c0_2 = arith.constant 0 : index
    %1 = vector.load %arg2[%c0_1, %c0_2] : memref<64x128xbf16, #tpu.memory_space<vmem>>, vector<64x128xbf16>
    %cst = arith.constant dense<0.000000e+00> : vector<16x128xf32>
    %2 = tpu.matmul %0, %1, %cst {dimension_numbers = #tpu.dot_dimension_numbers<[1], [0], [0], [1], [0, 0, 1, 1], [], []>} : vector<16x64xbf16>, vector<64x128xbf16>, vector<16x128xf32> -> vector<16x128xf32>
    %c0_3 = arith.constant 0 : index
    %c0_4 = arith.constant 0 : index
    %3 = vector.load %arg3[%c0_3, %c0_4] : memref<16x128xf32, #tpu.memory_space<vmem>>, vector<16x128xf32>
    %4 = arith.addf %2, %3 : vector<16x128xf32>
    %5 = arith.truncf %4 : vector<16x128xf32> to vector<16x128xbf16>
    %c0_5 = arith.constant 0 : index
    %c0_6 = arith.constant 0 : index
    %6 = vector.load %arg4[%c0_5, %c0_6] : memref<16x128xbf16, #tpu.memory_space<vmem>>, vector<16x128xbf16>
    tpu.vector_store %arg4[%c0_5, %c0_6], %5 {strides = array<i32>} : memref<16x128xbf16, #tpu.memory_space<vmem>>, vector<16x128xbf16>,
    return
  }
  func.func @transform_0(%arg0: i32) -> (i32, i32) {
    %c0_i32 = arith.constant 0 : i32
    %c0_i32_0 = arith.constant 0 : i32
    return %arg0, %c0_i32 : i32, i32
  }
  func.func @transform_1(%arg0: i32) -> (i32, i32) {
    %c0_i32 = arith.constant 0 : i32
    %c0_i32_0 = arith.constant 0 : i32
    %c0_i32_1 = arith.constant 0 : i32
    return %c0_i32, %c0_i32_0 : i32, i32
  }
  func.func @transform_2(%arg0: i32) -> (i32, i32) {
    %c0_i32 = arith.constant 0 : i32
    %c0_i32_0 = arith.constant 0 : i32
    %c0_i32_1 = arith.constant 0 : i32
    return %c0_i32, %c0_i32_0 : i32, i32
  }
  func.func @transform_3(%arg0: i32) -> (i32, i32) {
    %c0_i32 = arith.constant 0 : i32
    %c0_i32_0 = arith.constant 0 : i32
    return %arg0, %c0_i32 : i32, i32
  }
}

</mosaic_0001>

<llo_original>
// kernel: _lambda_.1
$region0: #{_lambda_.1}
  #allocation0 [shape = 'u32[]', space=smem, size = 0x4, offset = 0x4, fixed_abs, tag = 'smem constant byte address 0x4 - core index']
  #allocation1 [shape = 'u32[144,128]{1,0:T(1,128)}', space=vmem, size = 0x12000, scoped, tag = 'internal scratch']
  %s0 = inlined_call_operand.vmem [shape: bf16[32,64], index: 0, kind: input, shape index: {}]
  %s1 = inlined_call_operand.vmem [shape: bf16[64,128], index: 1, kind: input, shape index: {}]
  %s2 = inlined_call_operand.vmem [shape: f32[16,128], index: 2, kind: input, shape index: {}]
  %s3 = inlined_call_operand.hbm [shape: bf16[32,128], index: 3, kind: output, shape index: {}]
  %s4 = sld [smem:[#allocation0]]
  $region45: #{_lambda_.1} parent=0
    _
  %s6 = ssub.s32 1, %s4
  %s7 = scalar_select 0, %s6, %s4
  $region1: #{_lambda_.1} parent=0
    #allocation2 [shape = 'u8[8192]{0}', space=vmem, size = 0x2000, scoped, tag = 'output window, operand 0']
    #allocation3 [shape = 's32[2]{0}', space=sflag, size = 0x8, scoped, tag = 'scoped memory for _lambda_.1']
    %8 = vsyncpa [#allocation3], 0
    %s9 = scalar_lea.sflag [#allocation3], 1
    %10 = vsyncpa %s9, 0
    loop: start=0, step=1, limit=4
    $region2: #{_lambda_.1} parent=1 // loop_pre_header
      _
    $region3: #{_lambda_.1} parent=1 // loop_header
      %s12 = sphi 0, %s16
      %p13 = scmp.ge.s32.totalorder %s12, 4
      %s22 = sphi 0, %s24
      %s25 = sphi 0, %s22
      %s26 = sphi 0, %s25
      %s42 = sphi 0, %s26
      %s46 = sphi 0, %s46
      %s48 = sphi 0, %s46
      %s49 = sphi 0, %s48
      %s63 = sphi 0, %s49
      %s67 = sphi 0, %s67
      %s69 = sphi 0, %s67
      %s70 = sphi 0, %s69
      %s84 = sphi 0, %s70
      %s90 = sphi 0, %s92
      %s93 = sphi 0, %s90
      %s94 = sphi 0, %s93
      %s110 = sphi 0, %s94
    $region4: #{_lambda_.1} parent=1 // loop_header_branch
      %15 = sbr.rel (%p13) target = $region8
    $region5: #{_lambda_.1} parent=1 // loop_body
      %s17 = ssub.s32 %s12, 1
      %s18 = ssub.s32 %s12, 2
      %s19 = sadd.s32 %s12, 1
      %s20 = ssub.s32 %s12, %s19
      %p21 = scmp.eq.s32.totalorder %s20, 0
      %s23 = sadd.s32 %s22, 1
      %s24 = scalar_select %p21, %s22, %s23
      %p27 = pneg %p21
      %p28 = scmp.eq.s32.totalorder %s12, 1
      %p29 = por %p27, %p28
      %p30 = scmp.ne.s32.totalorder %s22, %s25
      %p31 = scmp.eq.s32.totalorder %s12, 0
      %p32 = por %p30, %p31
      %p33 = scmp.ne.s32.totalorder %s22, %s25
      %p34 = scmp.eq.s32.totalorder %s17, 1
      %p35 = por %p33, %p34
      %p36 = scmp.ne.s32.totalorder %s25, %s26
      %p37 = scmp.eq.s32.totalorder %s17, 0
      %p38 = por %p36, %p37
      %p39 = scmp.ne.s32.totalorder %s25, %s26
      %p40 = scmp.eq.s32.totalorder %s18, 1
      %p41 = por %p39, %p40
      %p43 = scmp.ne.s32.totalorder %s26, %s42
      %p44 = scmp.eq.s32.totalorder %s18, 0
      %p45 = por %p43, %p44
      %s47 = sadd.s32 %s46, 1
      %p50 = scmp.eq.s32.totalorder %s12, 1
      %p51 = scmp.ne.s32.totalorder %s46, %s48
      %p52 = scmp.eq.s32.totalorder %s12, 0
      %p53 = por %p51, %p52
      %p54 = scmp.ne.s32.totalorder %s46, %s48
      %p55 = scmp.eq.s32.totalorder %s17, 1
      %p56 = por %p54, %p55
      %p57 = scmp.ne.s32.totalorder %s48, %s49
      %p58 = scmp.eq.s32.totalorder %s17, 0
      %p59 = por %p57, %p58
      %p60 = scmp.ne.s32.totalorder %s48, %s49
      %p61 = scmp.eq.s32.totalorder %s18, 1
      %p62 = por %p60, %p61
      %p64 = scmp.ne.s32.totalorder %s49, %s63
      %p65 = scmp.eq.s32.totalorder %s18, 0
      %p66 = por %p64, %p65
      %s68 = sadd.s32 %s67, 1
      %p71 = scmp.eq.s32.totalorder %s12, 1
      %p72 = scmp.ne.s32.totalorder %s67, %s69
      %p73 = scmp.eq.s32.totalorder %s12, 0
      %p74 = por %p72, %p73
      %p75 = scmp.ne.s32.totalorder %s67, %s69
      %p76 = scmp.eq.s32.totalorder %s17, 1
      %p77 = por %p75, %p76
      %p78 = scmp.ne.s32.totalorder %s69, %s70
      %p79 = scmp.eq.s32.totalorder %s17, 0
      %p80 = por %p78, %p79
      %p81 = scmp.ne.s32.totalorder %s69, %s70
      %p82 = scmp.eq.s32.totalorder %s18, 1
      %p83 = por %p81, %p82
      %p85 = scmp.ne.s32.totalorder %s70, %s84
      %p86 = scmp.eq.s32.totalorder %s18, 0
      %p87 = por %p85, %p86
      %s88 = ssub.s32 %s12, %s19
      %p89 = scmp.eq.s32.totalorder %s88, 0
      %s91 = sadd.s32 %s90, 1
      %s92 = scalar_select %p89, %s90, %s91
      %p95 = pneg %p89
      %p96 = scmp.eq.s32.totalorder %s12, 1
      %p97 = por %p95, %p96
      %p98 = scmp.ne.s32.totalorder %s90, %s93
      %p99 = scmp.eq.s32.totalorder %s12, 0
      %p100 = por %p98, %p99
      %p101 = scmp.ne.s32.totalorder %s90, %s93
      %p102 = scmp.eq.s32.totalorder %s17, 1
      %p103 = por %p101, %p102
      %p104 = scmp.ne.s32.totalorder %s93, %s94
      %p105 = scmp.eq.s32.totalorder %s17, 0
      %p106 = por %p104, %p105
      %p107 = scmp.ne.s32.totalorder %s93, %s94
      %p108 = scmp.eq.s32.totalorder %s18, 1
      %p109 = por %p107, %p108
      %p111 = scmp.ne.s32.totalorder %s94, %s110
      %p112 = scmp.eq.s32.totalorder %s18, 0
      %p113 = por %p111, %p112
      %p114 = scmp.le.s32.totalorder 1, %s12
      %p115 = scmp.lt.s32.totalorder %s12, 3
      %p116 = pnand %p114, %p115
      %p117 = pneg %p116
      // Predicated region
      $region9: #{_lambda_.1} parent=5 // pred_check
        _
      $region10: #{_lambda_.1} parent=5 // pred_check_branch
        %119 = sbr.rel (%p116) target = $region12
      $region11: #{_lambda_.1} parent=5 // pred_region
        %s120 = ssub.s32 %s12, 1
        // Predicated region
        $region13: #{_lambda_.1} parent=11 // pred_check
          %p121 = pneg %p59
        $region14: #{_lambda_.1} parent=11 // pred_check_branch
          %123 = sbr.rel (%p121) target = $region16
        $region15: #{_lambda_.1} parent=11 // pred_region
          _
        $region16: #{_lambda_.1} parent=11 // pred_fallthru
          _
        // Predicated region
        $region17: #{_lambda_.1} parent=11 // pred_check
          %p124 = pneg %p80
        $region18: #{_lambda_.1} parent=11 // pred_check_branch
          %126 = sbr.rel (%p124) target = $region20
        $region19: #{_lambda_.1} parent=11 // pred_region
          _
        $region20: #{_lambda_.1} parent=11 // pred_fallthru
          _
      $region12: #{_lambda_.1} parent=5 // pred_fallthru
        _
      %p127 = scmp.lt.s32.totalorder %s12, 2
      // Predicated region
      $region21: #{_lambda_.1} parent=5 // pred_check
        %p128 = pneg %p127
      $region22: #{_lambda_.1} parent=5 // pred_check_branch
        %130 = sbr.rel (%p128) target = $region24
      $region23: #{_lambda_.1} parent=5 // pred_region
        // Predicated region
        $region25: #{_lambda_.1} parent=23 // pred_check
          %p131 = pneg %p32
        $region26: #{_lambda_.1} parent=23 // pred_check_branch
          %133 = sbr.rel (%p131) target = $region28
        $region27: #{_lambda_.1} parent=23 // pred_region
          %s134 = smul.u32 2, %s12
          %p135 = scmp.lt.s32.totalorder %s134, 3
          %s136 = scalar_select %p135, %s134, 3
          %s137 = smul.addr %s136, 4
          %s138 = scalar_lea.vmem %s0, %s137
          %s139 = smul.u32 2, %s12
        $region28: #{_lambda_.1} parent=23 // pred_fallthru
          _
      $region24: #{_lambda_.1} parent=5 // pred_fallthru
        _
      %p140 = scmp.le.s32.totalorder 1, %s12
      %p141 = scmp.lt.s32.totalorder %s12, 3
      %p142 = pnand %p140, %p141
      %p143 = pneg %p142
      // Predicated region
      $region29: #{_lambda_.1} parent=5 // pred_check
        _
      $region30: #{_lambda_.1} parent=5 // pred_check_branch
        %145 = sbr.rel (%p142) target = $region32
      $region31: #{_lambda_.1} parent=5 // pred_region
        %s146 = ssub.s32 %s12, 1
        %s147 = smul.u32 2, %s17
        %p148 = scmp.lt.s32.totalorder %s147, 3
        %s149 = scalar_select %p148, %s147, 3
        %s150 = smul.addr %s149, 4
        %s151 = scalar_lea.vmem %s0, %s150
        %p152 = pneg %p38
        %p153 = pneg %p35
        %p154 = pneg %p59
        %p155 = pneg %p56
        %p156 = pneg %p80
        %p157 = pneg %p77
        %p158 = pneg %p106
        %p159 = pneg %p103
        %s160 = sand.u32 %s93, 1
        %s161 = scalar_lea.sflag [#allocation3], %s160
        %s162 = sand.u32 %s93, 1
        %s163 = smul.addr %s162, 8
        %s164 = scalar_lea.vmem [#allocation2], %s163
        %s165 = smul.u32 2, %s17
        %p166 = scmp.lt.s32.totalorder %s165, 3
        %s167 = scalar_select %p166, %s165, 3
        %s168 = smul.addr %s167, 4
        %s169 = scalar_lea.vmem %s0, %s168
        %s170 = smul.u32 2, %s17
        %s171 = smul.u32 2, %s17
        %v173 = vld [vmem:[%s169] sm:$0xf]
        %v174 = vld [vmem:[%s169 + $0x4] sm:$0xf]
        %v175 = vld [vmem:[%s1] sm:$0xf]
        %v176 = vld [vmem:[%s1 + $0x4] sm:$0xf]
        %v177 = vld [vmem:[%s1 + $0x8] sm:$0xf]
        %v178 = vld [vmem:[%s1 + $0xc] sm:$0xf]
        %v179 = vld [vmem:[%s1 + $0x10] sm:$0xf]
        %v180 = vld [vmem:[%s1 + $0x14] sm:$0xf]
        %v181 = vld [vmem:[%s1 + $0x18] sm:$0xf]
        %v182 = vld [vmem:[%s1 + $0x1c] sm:$0xf]
        %v183 = vld [vmem:[%s2] sm:$0xff]
        %v184 = vld [vmem:[%s2 + $0x8] sm:$0xff]
        %v187 = vunpack.c.l.b16 %v173
        %v188 = vunpack.c.l.b16 %v174
        %v189 = vpack.c.b16 %v188, %v187
        %v198 = vunpack.c.l.b16 %v175
        %v199 = vunpack.c.l.b16 %v176
        %v200 = vunpack.c.l.b16 %v177
        %v201 = vunpack.c.l.b16 %v178
        %v202 = vunpack.c.l.b16 %v179
        %v203 = vunpack.c.l.b16 %v180
        %v204 = vunpack.c.l.b16 %v181
        %v205 = vunpack.c.l.b16 %v182
        %v206 = vpack.c.b16 %v199, %v198
        %v207 = vpack.c.b16 %v201, %v200
        %v208 = vpack.c.b16 %v203, %v202
        %v209 = vpack.c.b16 %v205, %v204
        %vm214 = vcmask 523264
        %v216 = vsel %vm214, %v189, 0
        %218 = vmatprep.subr.bf16.mxu0 0
        %219 = vmatpush1.bf16.msra.mxu0 0
        %220 = vmatprep.subr.bf16.mxu0 0
        %221 = vmatpush1.bf16.msra.mxu0 0
        %222 = vmatprep.subr.bf16.mxu0 0
        %223 = vmatpush1.bf16.msra.mxu0 0
        %224 = vmatprep.subr.bf16.mxu0 0
        %225 = vmatpush1.bf16.msra.mxu0 0
        %226 = vmatprep.subr.bf16.mxu0 0
        %227 = vmatpush1.bf16.msra.mxu0 %v209
        %228 = vmatprep.subr.bf16.mxu0 0
        %229 = vmatpush1.bf16.msra.mxu0 %v208
        %230 = vmatprep.subr.bf16.mxu0 0
        %231 = vmatpush1.bf16.msra.mxu0 %v207
        %232 = vmatprep.subr.bf16.mxu0 0
        %233 = vmatpush1.bf16.msra.mxu0 %v206
        %234 = vmatprep.subr.bf16.mxu0 0
        %235 = vmatpush2.bf16.msra.mxu0 0
        %236 = vmatprep.subr.bf16.mxu0 0
        %237 = vmatpush2.bf16.msra.mxu0 0
        %238 = vmatprep.subr.bf16.mxu0 0
        %239 = vmatpush2.bf16.msra.mxu0 0
        %240 = vmatprep.subr.bf16.mxu0 0
        %241 = vmatpush2.bf16.msra.mxu0 0
        %242 = vmatprep.subr.bf16.mxu0 0
        %243 = vmatpush2.bf16.msra.mxu0 0
        %244 = vmatprep.subr.bf16.mxu0 0
        %245 = vmatpush2.bf16.msra.mxu0 0
        %246 = vmatprep.subr.bf16.mxu0 0
        %247 = vmatpush2.bf16.msra.mxu0 0
        %248 = vmatprep.subr.bf16.mxu0 0
        %249 = vmatpush2.bf16.msra.mxu0 0
        %250 = vmatprep.mubr.bf16.mxu0 0
        %251 = vmatmul.mubr.bf16.gmra.mxu0 %v216
        %v252 = vpop.f32.mrf.mxu0
        %v253 = vadd.f32 %v183, %v252
        %v254 = vpop.f32.mrf.mxu0
        %v255 = vpop.f32.mrf.mxu0
        %v256 = vadd.f32 %v184, %v255
        %v257 = vpop.f32.mrf.mxu0
        %258 = vdwg.mxu0
        %v259 = vpack.c.bf16 %v256, %v253
        %v261 = vunpack.c.l.b16 %v259
        %v262 = vunpack.c.h.b16 %v259
        %v263 = vpack.c.b16 %v261, %v261
        %v264 = vpack.c.b16 %v262, %v262
        %267 = vst [vmem:[%s164] sm:$0xf] %v263
        %268 = vst [vmem:[%s164 + $0x4] sm:$0xf] %v264
        %s269 = sand.u32 %s93, 1
        %s270 = scalar_lea.sflag [#allocation3], %s269
        %s271 = sand.u32 %s93, 1
        %s272 = smul.addr %s271, 8
        %s273 = scalar_lea.vmem [#allocation2], %s272
        // Predicated region
        $region33: #{_lambda_.1} parent=31 // pred_check
          %p274 = pneg %p103
        $region34: #{_lambda_.1} parent=31 // pred_check_branch
          %276 = sbr.rel (%p274) target = $region36
        $region35: #{_lambda_.1} parent=31 // pred_region
          %s277 = smul.u32 2, %s17
          %s279 = ssub.s32 128, 128
          %280 = vsyncadd %s270, %s279
          %s281 = smul.addr %s277, 64
          %s282 = scalar_lea.hbm %s3, %s281
          %s283 = sshll.u32 %s273, 4
          %s284 = int_to_ptr.vmem [resolvable:$true] %s283
          %289 = dma.vmem_to_hbm [thread:$0]  %s284, 128, %s282, %s270, 64, 64, 4
        $region36: #{_lambda_.1} parent=31 // pred_fallthru
          _
      $region32: #{_lambda_.1} parent=5 // pred_fallthru
        _
      %p290 = scmp.le.s32.totalorder 2, %s12
      // Predicated region
      $region37: #{_lambda_.1} parent=5 // pred_check
        %p291 = pneg %p290
      $region38: #{_lambda_.1} parent=5 // pred_check_branch
        %293 = sbr.rel (%p291) target = $region40
      $region39: #{_lambda_.1} parent=5 // pred_region
        %s294 = ssub.s32 %s12, 2
        // Predicated region
        $region41: #{_lambda_.1} parent=39 // pred_check
          %p295 = pneg %p109
        $region42: #{_lambda_.1} parent=39 // pred_check_branch
          %297 = sbr.rel (%p295) target = $region44
        $region43: #{_lambda_.1} parent=39 // pred_region
          %s298 = sand.u32 %s94, 1
          %s299 = scalar_lea.sflag [#allocation3], %s298
          %s300 = sand.u32 %s94, 1
          %s301 = smul.addr %s300, 8
          %s302 = scalar_lea.vmem [#allocation2], %s301
          %303 = dma.done %s299, 128
        $region44: #{_lambda_.1} parent=39 // pred_fallthru
          _
      $region40: #{_lambda_.1} parent=5 // pred_fallthru
        _
    $region6: #{_lambda_.1} parent=1 // loop_footer
      %s16 = sadd.s32 1, %s12
    $region7: #{_lambda_.1} parent=1 // loop_footer_branch
      %11 = sbr.rel target = $region3
    $region8: #{_lambda_.1} parent=1 // loop_exit
      _
    %304 = vsyncpa [#allocation3], 1
    %s305 = scalar_lea.sflag [#allocation3], 1
    %306 = vsyncpa %s305, 1

// kernel: _lambda_.1
$region0: #{_lambda_.1}
  #allocation0 [shape = 'u32[]', space=smem, size = 0x4, offset = 0x4, fixed_abs, tag = 'smem constant byte address 0x4 - core index']
  #allocation1 [shape = 'u32[144,128]{1,0:T(1,128)}', space=vmem, size = 0x12000, scoped, tag = 'internal scratch']
  %s0 = inlined_call_operand.vmem [shape: bf16[32,64], index: 0, kind: input, shape index: {}]
  %s1 = inlined_call_operand.vmem [shape: bf16[64,128], index: 1, kind: input, shape index: {}]
  %s2 = inlined_call_operand.vmem [shape: f32[16,128], index: 2, kind: input, shape index: {}]
  %s3 = inlined_call_operand.hbm [shape: bf16[32,128], index: 3, kind: output, shape index: {}]
  %s4 = sld [smem:[#allocation0]]
  $region45: #{_lambda_.1} parent=0
    _
  %s6 = ssub.s32 1, %s4
  %s7 = scalar_select 0, %s6, %s4
  $region1: #{_lambda_.1} parent=0
    #allocation2 [shape = 'u8[8192]{0}', space=vmem, size = 0x2000, scoped, tag = 'output window, operand 0']
    #allocation3 [shape = 's32[2]{0}', space=sflag, size = 0x8, scoped, tag = 'scoped memory for _lambda_.1']
    %8 = vsyncpa [#allocation3], 0
    %s9 = scalar_lea.sflag [#allocation3], 1
    %10 = vsyncpa %s9, 0
    loop: start=0, step=1, limit=4
    $region2: #{_lambda_.1} parent=1 // loop_pre_header
      _
    $region3: #{_lambda_.1} parent=1 // loop_header
      %s12 = sphi 0, %s16
      %p13 = scmp.ge.s32.totalorder %s12, 4
      %s22 = sphi 0, %s24
      %s25 = sphi 0, %s22
      %s26 = sphi 0, %s25
      %s42 = sphi 0, %s26
      %s46 = sphi 0, %s46
      %s48 = sphi 0, %s46
      %s49 = sphi 0, %s48
      %s63 = sphi 0, %s49
      %s67 = sphi 0, %s67
      %s69 = sphi 0, %s67
      %s70 = sphi 0, %s69
      %s84 = sphi 0, %s70
      %s90 = sphi 0, %s92
      %s93 = sphi 0, %s90
      %s94 = sphi 0, %s93
      %s110 = sphi 0, %s94
    $region4: #{_lambda_.1} parent=1 // loop_header_branch
      %15 = sbr.rel (%p13) target = $region8
    $region5: #{_lambda_.1} parent=1 // loop_body
      %s17 = ssub.s32 %s12, 1
      %s18 = ssub.s32 %s12, 2
      %s19 = sadd.s32 %s12, 1
      %s20 = ssub.s32 %s12, %s19
      %p21 = scmp.eq.s32.totalorder %s20, 0
      %s23 = sadd.s32 %s22, 1
      %s24 = scalar_select %p21, %s22, %s23
      %p27 = pneg %p21
      %p28 = scmp.eq.s32.totalorder %s12, 1
      %p29 = por %p27, %p28
      %p30 = scmp.ne.s32.totalorder %s22, %s25
      %p31 = scmp.eq.s32.totalorder %s12, 0
      %p32 = por %p30, %p31
      %p33 = scmp.ne.s32.totalorder %s22, %s25
      %p34 = scmp.eq.s32.totalorder %s17, 1
      %p35 = por %p33, %p34
      %p36 = scmp.ne.s32.totalorder %s25, %s26
      %p37 = scmp.eq.s32.totalorder %s17, 0
      %p38 = por %p36, %p37
      %p39 = scmp.ne.s32.totalorder %s25, %s26
      %p40 = scmp.eq.s32.totalorder %s18, 1
      %p41 = por %p39, %p40
      %p43 = scmp.ne.s32.totalorder %s26, %s42
      %p44 = scmp.eq.s32.totalorder %s18, 0
      %p45 = por %p43, %p44
      %s47 = sadd.s32 %s46, 1
      %p50 = scmp.eq.s32.totalorder %s12, 1
      %p51 = scmp.ne.s32.totalorder %s46, %s48
      %p52 = scmp.eq.s32.totalorder %s12, 0
      %p53 = por %p51, %p52
      %p54 = scmp.ne.s32.totalorder %s46, %s48
      %p55 = scmp.eq.s32.totalorder %s17, 1
      %p56 = por %p54, %p55
      %p57 = scmp.ne.s32.totalorder %s48, %s49
      %p58 = scmp.eq.s32.totalorder %s17, 0
      %p59 = por %p57, %p58
      %p60 = scmp.ne.s32.totalorder %s48, %s49
      %p61 = scmp.eq.s32.totalorder %s18, 1
      %p62 = por %p60, %p61
      %p64 = scmp.ne.s32.totalorder %s49, %s63
      %p65 = scmp.eq.s32.totalorder %s18, 0
      %p66 = por %p64, %p65
      %s68 = sadd.s32 %s67, 1
      %p71 = scmp.eq.s32.totalorder %s12, 1
      %p72 = scmp.ne.s32.totalorder %s67, %s69
      %p73 = scmp.eq.s32.totalorder %s12, 0
      %p74 = por %p72, %p73
      %p75 = scmp.ne.s32.totalorder %s67, %s69
      %p76 = scmp.eq.s32.totalorder %s17, 1
      %p77 = por %p75, %p76
      %p78 = scmp.ne.s32.totalorder %s69, %s70
      %p79 = scmp.eq.s32.totalorder %s17, 0
      %p80 = por %p78, %p79
      %p81 = scmp.ne.s32.totalorder %s69, %s70
      %p82 = scmp.eq.s32.totalorder %s18, 1
      %p83 = por %p81, %p82
      %p85 = scmp.ne.s32.totalorder %s70, %s84
      %p86 = scmp.eq.s32.totalorder %s18, 0
      %p87 = por %p85, %p86
      %s88 = ssub.s32 %s12, %s19
      %p89 = scmp.eq.s32.totalorder %s88, 0
      %s91 = sadd.s32 %s90, 1
      %s92 = scalar_select %p89, %s90, %s91
      %p95 = pneg %p89
      %p96 = scmp.eq.s32.totalorder %s12, 1
      %p97 = por %p95, %p96
      %p98 = scmp.ne.s32.totalorder %s90, %s93
      %p99 = scmp.eq.s32.totalorder %s12, 0
      %p100 = por %p98, %p99
      %p101 = scmp.ne.s32.totalorder %s90, %s93
      %p102 = scmp.eq.s32.totalorder %s17, 1
      %p103 = por %p101, %p102
      %p104 = scmp.ne.s32.totalorder %s93, %s94
      %p105 = scmp.eq.s32.totalorder %s17, 0
      %p106 = por %p104, %p105
      %p107 = scmp.ne.s32.totalorder %s93, %s94
      %p108 = scmp.eq.s32.totalorder %s18, 1
      %p109 = por %p107, %p108
      %p111 = scmp.ne.s32.totalorder %s94, %s110
      %p112 = scmp.eq.s32.totalorder %s18, 0
      %p113 = por %p111, %p112
      %p114 = scmp.le.s32.totalorder 1, %s12
      %p115 = scmp.lt.s32.totalorder %s12, 3
      %p116 = pnand %p114, %p115
      %p117 = pneg %p116
      // Predicated region
      $region9: #{_lambda_.1} parent=5 // pred_check
        _
      $region10: #{_lambda_.1} parent=5 // pred_check_branch
        %119 = sbr.rel (%p116) target = $region12
      $region11: #{_lambda_.1} parent=5 // pred_region
        %s120 = ssub.s32 %s12, 1
        // Predicated region
        $region13: #{_lambda_.1} parent=11 // pred_check
          %p121 = pneg %p59
        $region14: #{_lambda_.1} parent=11 // pred_check_branch
          %123 = sbr.rel (%p121) target = $region16
        $region15: #{_lambda_.1} parent=11 // pred_region
          _
        $region16: #{_lambda_.1} parent=11 // pred_fallthru
          _
        // Predicated region
        $region17: #{_lambda_.1} parent=11 // pred_check
          %p124 = pneg %p80
        $region18: #{_lambda_.1} parent=11 // pred_check_branch
          %126 = sbr.rel (%p124) target = $region20
        $region19: #{_lambda_.1} parent=11 // pred_region
          _
        $region20: #{_lambda_.1} parent=11 // pred_fallthru
          _
      $region12: #{_lambda_.1} parent=5 // pred_fallthru
        _
      %p127 = scmp.lt.s32.totalorder %s12, 2
      // Predicated region
      $region21: #{_lambda_.1} parent=5 // pred_check
        %p128 = pneg %p127
      $region22: #{_lambda_.1} parent=5 // pred_check_branch
        %130 = sbr.rel (%p128) target = $region24
      $region23: #{_lambda_.1} parent=5 // pred_region
        // Predicated region
        $region25: #{_lambda_.1} parent=23 // pred_check
          %p131 = pneg %p32
        $region26: #{_lambda_.1} parent=23 // pred_check_branch
          %133 = sbr.rel (%p131) target = $region28
        $region27: #{_lambda_.1} parent=23 // pred_region
          %s134 = smul.u32 2, %s12
          %p135 = scmp.lt.s32.totalorder %s134, 3
          %s136 = scalar_select %p135, %s134, 3
          %s137 = smul.addr %s136, 4
          %s138 = scalar_lea.vmem %s0, %s137
          %s139 = smul.u32 2, %s12
        $region28: #{_lambda_.1} parent=23 // pred_fallthru
          _
      $region24: #{_lambda_.1} parent=5 // pred_fallthru
        _
      %p140 = scmp.le.s32.totalorder 1, %s12
      %p141 = scmp.lt.s32.totalorder %s12, 3
      %p142 = pnand %p140, %p141
      %p143 = pneg %p142
      // Predicated region
      $region29: #{_lambda_.1} parent=5 // pred_check
        _
      $region30: #{_lambda_.1} parent=5 // pred_check_branch
        %145 = sbr.rel (%p142) target = $region32
      $region31: #{_lambda_.1} parent=5 // pred_region
        %s146 = ssub.s32 %s12, 1
        %s147 = smul.u32 2, %s17
        %p148 = scmp.lt.s32.totalorder %s147, 3
        %s149 = scalar_select %p148, %s147, 3
        %s150 = smul.addr %s149, 4
        %s151 = scalar_lea.vmem %s0, %s150
        %p152 = pneg %p38
        %p153 = pneg %p35
        %p154 = pneg %p59
        %p155 = pneg %p56
        %p156 = pneg %p80
        %p157 = pneg %p77
        %p158 = pneg %p106
        %p159 = pneg %p103
        %s160 = sand.u32 %s93, 1
        %s161 = scalar_lea.sflag [#allocation3], %s160
        %s162 = sand.u32 %s93, 1
        %s163 = smul.addr %s162, 8
        %s164 = scalar_lea.vmem [#allocation2], %s163
        %s165 = smul.u32 2, %s17
        %p166 = scmp.lt.s32.totalorder %s165, 3
        %s167 = scalar_select %p166, %s165, 3
        %s168 = smul.addr %s167, 4
        %s169 = scalar_lea.vmem %s0, %s168
        %s170 = smul.u32 2, %s17
        %s171 = smul.u32 2, %s17
        %v173 = vld [vmem:[%s169] sm:$0xf]
        %v174 = vld [vmem:[%s169 + $0x4] sm:$0xf]
        %v175 = vld [vmem:[%s1] sm:$0xf]
        %v176 = vld [vmem:[%s1 + $0x4] sm:$0xf]
        %v177 = vld [vmem:[%s1 + $0x8] sm:$0xf]
        %v178 = vld [vmem:[%s1 + $0xc] sm:$0xf]
        %v179 = vld [vmem:[%s1 + $0x10] sm:$0xf]
        %v180 = vld [vmem:[%s1 + $0x14] sm:$0xf]
        %v181 = vld [vmem:[%s1 + $0x18] sm:$0xf]
        %v182 = vld [vmem:[%s1 + $0x1c] sm:$0xf]
        %v183 = vld [vmem:[%s2] sm:$0xff]
        %v184 = vld [vmem:[%s2 + $0x8] sm:$0xff]
        %v187 = vunpack.c.l.b16 %v173
        %v188 = vunpack.c.l.b16 %v174
        %v189 = vpack.c.b16 %v188, %v187
        %v198 = vunpack.c.l.b16 %v175
        %v199 = vunpack.c.l.b16 %v176
        %v200 = vunpack.c.l.b16 %v177
        %v201 = vunpack.c.l.b16 %v178
        %v202 = vunpack.c.l.b16 %v179
        %v203 = vunpack.c.l.b16 %v180
        %v204 = vunpack.c.l.b16 %v181
        %v205 = vunpack.c.l.b16 %v182
        %v206 = vpack.c.b16 %v199, %v198
        %v207 = vpack.c.b16 %v201, %v200
        %v208 = vpack.c.b16 %v203, %v202
        %v209 = vpack.c.b16 %v205, %v204
        %vm214 = vcmask 523264
        %v216 = vsel %vm214, %v189, 0
        %218 = vmatprep.subr.bf16.mxu0 0
        %219 = vmatpush1.bf16.msra.mxu0 0
        %220 = vmatprep.subr.bf16.mxu0 0
        %221 = vmatpush1.bf16.msra.mxu0 0
        %222 = vmatprep.subr.bf16.mxu0 0
        %223 = vmatpush1.bf16.msra.mxu0 0
        %224 = vmatprep.subr.bf16.mxu0 0
        %225 = vmatpush1.bf16.msra.mxu0 0
        %226 = vmatprep.subr.bf16.mxu0 0
        %227 = vmatpush1.bf16.msra.mxu0 %v209
        %228 = vmatprep.subr.bf16.mxu0 0
        %229 = vmatpush1.bf16.msra.mxu0 %v208
        %230 = vmatprep.subr.bf16.mxu0 0
        %231 = vmatpush1.bf16.msra.mxu0 %v207
        %232 = vmatprep.subr.bf16.mxu0 0
        %233 = vmatpush1.bf16.msra.mxu0 %v206
        %234 = vmatprep.subr.bf16.mxu0 0
        %235 = vmatpush2.bf16.msra.mxu0 0
        %236 = vmatprep.subr.bf16.mxu0 0
        %237 = vmatpush2.bf16.msra.mxu0 0
        %238 = vmatprep.subr.bf16.mxu0 0
        %239 = vmatpush2.bf16.msra.mxu0 0
        %240 = vmatprep.subr.bf16.mxu0 0
        %241 = vmatpush2.bf16.msra.mxu0 0
        %242 = vmatprep.subr.bf16.mxu0 0
        %243 = vmatpush2.bf16.msra.mxu0 0
        %244 = vmatprep.subr.bf16.mxu0 0
        %245 = vmatpush2.bf16.msra.mxu0 0
        %246 = vmatprep.subr.bf16.mxu0 0
        %247 = vmatpush2.bf16.msra.mxu0 0
        %248 = vmatprep.subr.bf16.mxu0 0
        %249 = vmatpush2.bf16.msra.mxu0 0
        %250 = vmatprep.mubr.bf16.mxu0 0
        %251 = vmatmul.mubr.bf16.gmra.mxu0 %v216
        %v252 = vpop.f32.mrf.mxu0
        %v253 = vadd.f32 %v183, %v252
        %v254 = vpop.f32.mrf.mxu0
        %v255 = vpop.f32.mrf.mxu0
        %v256 = vadd.f32 %v184, %v255
        %v257 = vpop.f32.mrf.mxu0
        %258 = vdwg.mxu0
        %v259 = vpack.c.bf16 %v256, %v253
        %v261 = vunpack.c.l.b16 %v259
        %v262 = vunpack.c.h.b16 %v259
        %v263 = vpack.c.b16 %v261, %v261
        %v264 = vpack.c.b16 %v262, %v262
        %267 = vst [vmem:[%s164] sm:$0xf] %v263
        %268 = vst [vmem:[%s164 + $0x4] sm:$0xf] %v264
        %s269 = sand.u32 %s93, 1
        %s270 = scalar_lea.sflag [#allocation3], %s269
        %s271 = sand.u32 %s93, 1
        %s272 = smul.addr %s271, 8
        %s273 = scalar_lea.vmem [#allocation2], %s272
        // Predicated region
        $region33: #{_lambda_.1} parent=31 // pred_check
          %p274 = pneg %p103
        $region34: #{_lambda_.1} parent=31 // pred_check_branch
          %276 = sbr.rel (%p274) target = $region36
        $region35: #{_lambda_.1} parent=31 // pred_region
          %s277 = smul.u32 2, %s17
          %s279 = ssub.s32 128, 128
          %280 = vsyncadd %s270, %s279
          %s281 = smul.addr %s277, 64
          %s282 = scalar_lea.hbm %s3, %s281
          %s283 = sshll.u32 %s273, 4
          %s284 = int_to_ptr.vmem [resolvable:$true] %s283
          %289 = dma.vmem_to_hbm [thread:$0]  %s284, 128, %s282, %s270, 64, 64, 4
        $region36: #{_lambda_.1} parent=31 // pred_fallthru
          _
      $region32: #{_lambda_.1} parent=5 // pred_fallthru
        _
      %p290 = scmp.le.s32.totalorder 2, %s12
      // Predicated region
      $region37: #{_lambda_.1} parent=5 // pred_check
        %p291 = pneg %p290
      $region38: #{_lambda_.1} parent=5 // pred_check_branch
        %293 = sbr.rel (%p291) target = $region40
      $region39: #{_lambda_.1} parent=5 // pred_region
        %s294 = ssub.s32 %s12, 2
        // Predicated region
        $region41: #{_lambda_.1} parent=39 // pred_check
          %p295 = pneg %p109
        $region42: #{_lambda_.1} parent=39 // pred_check_branch
          %297 = sbr.rel (%p295) target = $region44
        $region43: #{_lambda_.1} parent=39 // pred_region
          %s298 = sand.u32 %s94, 1
          %s299 = scalar_lea.sflag [#allocation3], %s298
          %s300 = sand.u32 %s94, 1
          %s301 = smul.addr %s300, 8
          %s302 = scalar_lea.vmem [#allocation2], %s301
          %303 = dma.done %s299, 128
        $region44: #{_lambda_.1} parent=39 // pred_fallthru
          _
      $region40: #{_lambda_.1} parent=5 // pred_fallthru
        _
    $region6: #{_lambda_.1} parent=1 // loop_footer
      %s16 = sadd.s32 1, %s12
    $region7: #{_lambda_.1} parent=1 // loop_footer_branch
      %11 = sbr.rel target = $region3
    $region8: #{_lambda_.1} parent=1 // loop_exit
      _
    %304 = vsyncpa [#allocation3], 1
    %s305 = scalar_lea.sflag [#allocation3], 1
    %306 = vsyncpa %s305, 1

</llo_original>
